<compile_context>
chip_gen: v7x
topology: tpu7x:2x2x1
jax: 0.10.0
libtpu: 0.0.40
codegen_flags: <defaults>
</compile_context>

<pallas_src>
import jax
import jax.numpy as jnp
import numpy as np
from jax.experimental import pallas as pl
from jax.experimental.pallas import tpu as pltpu


def _round_up(x, m):
    return (x + m - 1) // m * m


def _cross_atten_kernel(main_ref, aux_ref, wq_ref, wkv_ref, bq_ref, bv_ref,
                        out_ref):
    """One batch tile of the CrossAtten4AuxEmb forward pass.

    main_ref : (bb, H)      f32   main embedding tile
    aux_ref  : (bb, V*H)    f32   auxiliary embeddings tile (views flattened on lanes)
    wq_ref   : (H, H)       bf16  Wq^T (resident, single-buffered)
    wkv_ref  : (H, 2H)      bf16  [Wk^T | Wv^T] (resident, single-buffered)
    bq_ref   : (1, H)       f32   query bias
    bv_ref   : (1, H)       f32   value bias
    out_ref  : (bb, H)            fused embedding tile
    """
    H = wq_ref.shape[0]
    V = aux_ref.shape[1] // H                 # static number of views
    cdt = wq_ref.dtype                        # bf16 MXU operands

    main_c = main_ref[...].astype(cdt)        # (bb, H) bf16
    wq = wq_ref[...]
    wkv = wkv_ref[...]

    # Query from the main embedding (bq does NOT cancel in the softmax).
    q = jnp.dot(main_c, wq, preferred_element_type=jnp.float32) + bq_ref[...]

    # Key/value of the main embedding from one fused (H, 2H) matmul.
    # bk is dropped: q.(k+bk) = q.k + const(row) -> cancels in the softmax.
    kv0 = jnp.dot(main_c, wkv, preferred_element_type=jnp.float32)   # (bb, 2H)
    scores = [jnp.sum(q * kv0[:, :H], axis=-1, keepdims=True)]       # [(bb, 1)]
    values = [kv0[:, H:]]                                            # [(bb, H)]

    # One fused KV matmul per view; view slices are lane-aligned static views.
    for view in range(V):
        a = aux_ref[:, view * H:(view + 1) * H].astype(cdt)          # (bb, H)
        kv = jnp.dot(a, wkv, preferred_element_type=jnp.float32)     # (bb, 2H)
        scores.append(jnp.sum(q * kv[:, :H], axis=-1, keepdims=True))
        values.append(kv[:, H:])

    # Numerically-stable softmax over the N = V + 1 score columns (all f32).
    m = scores[0]
    for s in scores[1:]:
        m = jnp.maximum(m, s)
    probs = [jnp.exp(s - m) for s in scores]                         # (bb, 1) each
    denom = probs[0]
    for p in probs[1:]:
        denom = denom + p
    inv = pl.reciprocal(denom, approx=True)                          # EUP, not VALU

    fused = probs[0] * values[0]
    for p, v in zip(probs[1:], values[1:]):
        fused = fused + p * v
    # bv added once after normalization (softmax weights sum to 1).
    out_ref[...] = (fused * inv + bv_ref[...]).astype(out_ref.dtype)


def cross_atten_forward(main_emb, aux_emb, params, *, block_b=512,
                        vmem_budget_bytes=None):
    """Pallas implementation of CrossAtten4AuxEmb.forward.

    main_emb: (B, H) f32, aux_emb: (B, V, H) f32,
    params: PyTorch-layout Linear params (w*: (out, in), b*: (out,)).
    """
    B, H = main_emb.shape
    V = aux_emb.shape[1]

    # ---- Lane-dense hidden size: pad H to a multiple of 128 with zeros. ----
    Hp = _round_up(H, 128)
    dH = Hp - H
    if dH:
        main_emb = jnp.pad(main_emb, ((0, 0), (0, dH)))
        aux_emb = jnp.pad(aux_emb, ((0, 0), (0, 0), (0, dH)))

    pad_w = lambda w: jnp.pad(w.T, ((0, dH), (0, dH))).astype(jnp.bfloat16)
    wq_t = pad_w(params["wq"])                                        # (Hp, Hp)
    wkv_t = jnp.concatenate([pad_w(params["wk"]), pad_w(params["wv"])], axis=1)  # (Hp, 2Hp)
    bq = jnp.pad(params["bq"], (0, dH)).reshape(1, Hp)
    bv = jnp.pad(params["bv"], (0, dH)).reshape(1, Hp)
    # params["bk"] is intentionally unused: it cancels inside the softmax.

    # ---- Size the batch tile from a VMEM budget (per-generation aware). ----
    if vmem_budget_bytes is None:
        try:
            cap = pltpu.get_tpu_info().vmem_capacity_bytes
        except Exception:
            cap = 64 * 1024 * 1024                       # conservative fallback
        vmem_budget_bytes = int(cap * 0.55)

    io_per_row = 2 * (Hp + V * Hp + Hp) * 4              # main/aux/out, double-buffered
    temp_per_row = (V + 5) * Hp * 4                      # q, kv, values[], casts (estimate)
    weight_bytes = 3 * Hp * Hp * 2 + 2 * 8 * Hp * 4      # bf16 Wq + Wkv (Buffered(1)) + biases
    per_row = io_per_row + temp_per_row
    avail = max(vmem_budget_bytes - weight_bytes, 8 * per_row)

    bb = max(8, min(block_b, (avail // per_row) // 8 * 8))
    bb = min(bb, _round_up(B, 8))                        # never bigger than the batch
    if B > 8:                                            # >= 2 tiles -> both TCs busy (v7x)
        bb = min(bb, max(8, _round_up((B + 1) // 2, 8)))
    bb = _round_up(bb, 8)

    Bp = _round_up(B, bb)
    if Bp != B:
        main_emb = jnp.pad(main_emb, ((0, Bp - B), (0, 0)))
        aux_emb = jnp.pad(aux_emb, ((0, Bp - B), (0, 0), (0, 0)))
    nb = Bp // bb

    # Views flattened onto the lane axis: one contiguous, sublane-dense slab.
    aux_flat = aux_emb.reshape(Bp, V * Hp)

    total_est = bb * per_row + weight_bytes
    vmem_limit = int(min(max(32 << 20, total_est + (4 << 20)), 112 << 20))

    def resident(shape):
        # Constant index_map + single buffer: weights stay put across the grid.
        return pl.BlockSpec(shape, lambda i: (0,) * len(shape),
                            pipeline_mode=pl.Buffered(1))

    out = pl.pallas_call(
        _cross_atten_kernel,
        out_shape=jax.ShapeDtypeStruct((Bp, Hp), main_emb.dtype),
        grid=(nb,),
        in_specs=[
            pl.BlockSpec((bb, Hp), lambda i: (i, 0)),        # main tile
            pl.BlockSpec((bb, V * Hp), lambda i: (i, 0)),    # aux tile (flattened views)
            resident((Hp, Hp)),                              # Wq^T
            resident((Hp, 2 * Hp)),                          # [Wk^T | Wv^T]
            resident((1, Hp)),                               # bq
            resident((1, Hp)),                               # bv
        ],
        out_specs=pl.BlockSpec((bb, Hp), lambda i: (i, 0)),
        compiler_params=pltpu.CompilerParams(
            dimension_semantics=("parallel",),               # megacore on v7x
            vmem_limit_bytes=vmem_limit,
        ),
    )(main_emb, aux_flat, wq_t, wkv_t, bq, bv)

    return out[:B, :H]


def reference_forward_f32(main_emb, aux_emb, params):
    """Pure-JAX f32 reference matching the PyTorch module exactly."""
    m = main_emb[:, None, :]                                          # (B, 1, H)
    all_emb = jnp.concatenate([m, aux_emb], axis=1)                   # (B, N, H)
    q = m @ params["wq"].T + params["bq"]                             # (B, 1, H)
    k = all_emb @ params["wk"].T + params["bk"]                       # (B, N, H)
    v = all_emb @ params["wv"].T + params["bv"]                       # (B, N, H)
    atten = jnp.einsum("bqh,bkh->bqk", q, k)                          # (B, 1, N)
    atten = jax.nn.softmax(atten, axis=2)
    return jnp.einsum("bqk,bkh->bqh", atten, v)[:, 0, :]              # (B, H)


def reference_forward_matched(main_emb, aux_emb, params):
    """Reference with the kernel's precision recipe (bf16 MXU in, f32 acc/softmax)."""
    bf = lambda x: x.astype(jnp.bfloat16)
    wq_t, wk_t, wv_t = bf(params["wq"].T), bf(params["wk"].T), bf(params["wv"].T)
    all_emb = jnp.concatenate([main_emb[:, None, :], aux_emb], axis=1)
    q = jnp.dot(bf(main_emb), wq_t, preferred_element_type=jnp.float32) + params["bq"]
    k = jnp.einsum("bnh,hd->bnd", bf(all_emb), wk_t,
                   preferred_element_type=jnp.float32) + params["bk"]
    v = jnp.einsum("bnh,hd->bnd", bf(all_emb), wv_t,
                   preferred_element_type=jnp.float32) + params["bv"]
    s = jnp.einsum("bh,bnh->bn", q, k)
    p = jax.nn.softmax(s, axis=-1)
    return jnp.einsum("bn,bnh->bh", p, v)


def init_params(key, hidden):
    """Deterministic init matching nn.Linear parameter shapes (out, in)/(out,)."""
    ks = jax.random.split(key, 6)
    bound = 1.0 / jnp.sqrt(hidden)
    u = lambda k, shape: jax.random.uniform(k, shape, jnp.float32, -bound, bound)
    return {
        "wq": u(ks[0], (hidden, hidden)), "bq": u(ks[1], (hidden,)),
        "wk": u(ks[2], (hidden, hidden)), "bk": u(ks[3], (hidden,)),
        "wv": u(ks[4], (hidden, hidden)), "bv": u(ks[5], (hidden,)),
    }


if __name__ == "__main__":
    # Small but lane-dense demo shapes: batch not a multiple of the tile
    # (exercises padding), 2 grid steps (nb >= 2 rule), H a multiple of 128.
    B, V, H = 12, 3, 128

    key = jax.random.PRNGKey(0)
    k_main, k_aux, k_params = jax.random.split(key, 3)
    main_emb = jax.random.normal(k_main, (B, H), jnp.float32)
    aux_emb = jax.random.normal(k_aux, (B, V, H), jnp.float32)
    params = init_params(k_params, H)

    out = cross_atten_forward(main_emb, aux_emb, params)
    out = jax.block_until_ready(out)

    # Tight check vs. a reference using the same precision recipe ...
    ref_matched = reference_forward_matched(main_emb, aux_emb, params)
    np.testing.assert_allclose(np.asarray(out), np.asarray(ref_matched),
                               rtol=1e-2, atol=1e-2)
    # ... and a looser semantic check vs. the exact f32 (PyTorch) math.
    ref_f32 = reference_forward_f32(main_emb, aux_emb, params)
    np.testing.assert_allclose(np.asarray(out), np.asarray(ref_f32),
                               rtol=1e-1, atol=1e-1)
    print("KERNEL_OK")
</pallas_src>

<mosaic_0001>
module attributes {stable_mosaic.version = 11 : i64} {
  func.func @_cross_atten_kernel(%arg0: i32, %arg1: memref<8x128xf32, #tpu.memory_space<vmem>>, %arg2: memref<8x384xf32, #tpu.memory_space<vmem>>, %arg3: memref<128x128xbf16, #tpu.memory_space<vmem>>, %arg4: memref<128x256xbf16, #tpu.memory_space<vmem>>, %arg5: memref<1x128xf32, #tpu.memory_space<vmem>>, %arg6: memref<1x128xf32, #tpu.memory_space<vmem>>, %arg7: memref<8x128xf32, #tpu.memory_space<vmem>>) attributes {dimension_semantics = [#tpu.dimension_semantics<parallel>], iteration_bounds = array<i64: 2>, scalar_prefetch = 0 : i64, scratch_operands = 0 : i64, tpu.core_type = #tpu.core_type<tc>, window_params = [{transform_indices = @transform_0, window_bounds = array<i64: 8, 128>}, {transform_indices = @transform_1, window_bounds = array<i64: 8, 384>}, {pipeline_mode = #tpu.pipeline_mode<synchronous>, transform_indices = @transform_2, window_bounds = array<i64: 128, 128>}, {pipeline_mode = #tpu.pipeline_mode<synchronous>, transform_indices = @transform_3, window_bounds = array<i64: 128, 256>}, {pipeline_mode = #tpu.pipeline_mode<synchronous>, transform_indices = @transform_4, window_bounds = array<i64: 1, 128>}, {pipeline_mode = #tpu.pipeline_mode<synchronous>, transform_indices = @transform_5, window_bounds = array<i64: 1, 128>}, {transform_indices = @transform_6, window_bounds = array<i64: 8, 128>}]} {
    %c0 = arith.constant 0 : index
    %c0_0 = arith.constant 0 : index
    %0 = vector.load %arg1[%c0, %c0_0] : memref<8x128xf32, #tpu.memory_space<vmem>>, vector<8x128xf32>
    %1 = arith.truncf %0 : vector<8x128xf32> to vector<8x128xbf16>
    %c0_1 = arith.constant 0 : index
    %c0_2 = arith.constant 0 : index
    %2 = vector.load %arg3[%c0_1, %c0_2] : memref<128x128xbf16, #tpu.memory_space<vmem>>, vector<128x128xbf16>
    %c0_3 = arith.constant 0 : index
    %c0_4 = arith.constant 0 : index
    %3 = vector.load %arg4[%c0_3, %c0_4] : memref<128x256xbf16, #tpu.memory_space<vmem>>, vector<128x256xbf16>
    %cst = arith.constant dense<0.000000e+00> : vector<8x128xf32>
    %4 = tpu.matmul %1, %2, %cst {dimension_numbers = #tpu.dot_dimension_numbers<[1], [0], [0], [1], [0, 0, 1, 1], [], []>} : vector<8x128xbf16>, vector<128x128xbf16>, vector<8x128xf32> -> vector<8x128xf32>
    %c0_5 = arith.constant 0 : index
    %c0_6 = arith.constant 0 : index
    %5 = vector.load %arg5[%c0_5, %c0_6] : memref<1x128xf32, #tpu.memory_space<vmem>>, vector<1x128xf32>
    %6 = vector.broadcast %5 : vector<1x128xf32> to vector<8x128xf32>
    %7 = arith.addf %4, %6 : vector<8x128xf32>
    %cst_7 = arith.constant dense<0.000000e+00> : vector<8x256xf32>
    %8 = tpu.matmul %1, %3, %cst_7 {dimension_numbers = #tpu.dot_dimension_numbers<[1], [0], [0], [1], [0, 0, 1, 1], [], []>} : vector<8x128xbf16>, vector<128x256xbf16>, vector<8x256xf32> -> vector<8x256xf32>
    %9 = vector.extract_strided_slice %8 {offsets = [0, 0], sizes = [8, 128], strides = [1, 1]} : vector<8x256xf32> to vector<8x128xf32>
    %10 = arith.mulf %7, %9 : vector<8x128xf32>
    %cst_8 = arith.constant dense<0.000000e+00> : vector<8xf32>
    %11 = vector.multi_reduction <add>, %10, %cst_8 [1] : vector<8x128xf32> to vector<8xf32>
    %12 = vector.shape_cast %11 : vector<8xf32> to vector<8x1xf32>
    %13 = vector.extract_strided_slice %8 {offsets = [0, 128], sizes = [8, 128], strides = [1, 1]} : vector<8x256xf32> to vector<8x128xf32>
    %c0_9 = arith.constant 0 : index
    %c0_10 = arith.constant 0 : index
    %14 = vector.load %arg2[%c0_9, %c0_10] : memref<8x384xf32, #tpu.memory_space<vmem>>, vector<8x128xf32>
    %15 = arith.truncf %14 : vector<8x128xf32> to vector<8x128xbf16>
    %cst_11 = arith.constant dense<0.000000e+00> : vector<8x256xf32>
    %16 = tpu.matmul %15, %3, %cst_11 {dimension_numbers = #tpu.dot_dimension_numbers<[1], [0], [0], [1], [0, 0, 1, 1], [], []>} : vector<8x128xbf16>, vector<128x256xbf16>, vector<8x256xf32> -> vector<8x256xf32>
    %17 = vector.extract_strided_slice %16 {offsets = [0, 0], sizes = [8, 128], strides = [1, 1]} : vector<8x256xf32> to vector<8x128xf32>
    %18 = arith.mulf %7, %17 : vector<8x128xf32>
    %cst_12 = arith.constant dense<0.000000e+00> : vector<8xf32>
    %19 = vector.multi_reduction <add>, %18, %cst_12 [1] : vector<8x128xf32> to vector<8xf32>
    %20 = vector.shape_cast %19 : vector<8xf32> to vector<8x1xf32>
    %21 = vector.extract_strided_slice %16 {offsets = [0, 128], sizes = [8, 128], strides = [1, 1]} : vector<8x256xf32> to vector<8x128xf32>
    %c0_13 = arith.constant 0 : index
    %c128 = arith.constant 128 : index
    %22 = vector.load %arg2[%c0_13, %c128] : memref<8x384xf32, #tpu.memory_space<vmem>>, vector<8x128xf32>
    %23 = arith.truncf %22 : vector<8x128xf32> to vector<8x128xbf16>
    %cst_14 = arith.constant dense<0.000000e+00> : vector<8x256xf32>
    %24 = tpu.matmul %23, %3, %cst_14 {dimension_numbers = #tpu.dot_dimension_numbers<[1], [0], [0], [1], [0, 0, 1, 1], [], []>} : vector<8x128xbf16>, vector<128x256xbf16>, vector<8x256xf32> -> vector<8x256xf32>
    %25 = vector.extract_strided_slice %24 {offsets = [0, 0], sizes = [8, 128], strides = [1, 1]} : vector<8x256xf32> to vector<8x128xf32>
    %26 = arith.mulf %7, %25 : vector<8x128xf32>
    %cst_15 = arith.constant dense<0.000000e+00> : vector<8xf32>
    %27 = vector.multi_reduction <add>, %26, %cst_15 [1] : vector<8x128xf32> to vector<8xf32>
    %28 = vector.shape_cast %27 : vector<8xf32> to vector<8x1xf32>
    %29 = vector.extract_strided_slice %24 {offsets = [0, 128], sizes = [8, 128], strides = [1, 1]} : vector<8x256xf32> to vector<8x128xf32>
    %c0_16 = arith.constant 0 : index
    %c256 = arith.constant 256 : index
    %30 = vector.load %arg2[%c0_16, %c256] : memref<8x384xf32, #tpu.memory_space<vmem>>, vector<8x128xf32>
    %31 = arith.truncf %30 : vector<8x128xf32> to vector<8x128xbf16>
    %cst_17 = arith.constant dense<0.000000e+00> : vector<8x256xf32>
    %32 = tpu.matmul %31, %3, %cst_17 {dimension_numbers = #tpu.dot_dimension_numbers<[1], [0], [0], [1], [0, 0, 1, 1], [], []>} : vector<8x128xbf16>, vector<128x256xbf16>, vector<8x256xf32> -> vector<8x256xf32>
    %33 = vector.extract_strided_slice %32 {offsets = [0, 0], sizes = [8, 128], strides = [1, 1]} : vector<8x256xf32> to vector<8x128xf32>
    %34 = arith.mulf %7, %33 : vector<8x128xf32>
    %cst_18 = arith.constant dense<0.000000e+00> : vector<8xf32>
    %35 = vector.multi_reduction <add>, %34, %cst_18 [1] : vector<8x128xf32> to vector<8xf32>
    %36 = vector.shape_cast %35 : vector<8xf32> to vector<8x1xf32>
    %37 = vector.extract_strided_slice %32 {offsets = [0, 128], sizes = [8, 128], strides = [1, 1]} : vector<8x256xf32> to vector<8x128xf32>
    %38 = arith.maximumf %12, %20 : vector<8x1xf32>
    %39 = arith.maximumf %38, %28 : vector<8x1xf32>
    %40 = arith.maximumf %39, %36 : vector<8x1xf32>
    %41 = arith.subf %12, %40 : vector<8x1xf32>
    %42 = math.exp %41 : vector<8x1xf32>
    %43 = arith.subf %20, %40 : vector<8x1xf32>
    %44 = math.exp %43 : vector<8x1xf32>
    %45 = arith.subf %28, %40 : vector<8x1xf32>
    %46 = math.exp %45 : vector<8x1xf32>
    %47 = arith.subf %36, %40 : vector<8x1xf32>
    %48 = math.exp %47 : vector<8x1xf32>
    %49 = arith.addf %42, %44 : vector<8x1xf32>
    %50 = arith.addf %49, %46 : vector<8x1xf32>
    %51 = arith.addf %50, %48 : vector<8x1xf32>
    %52 = tpu.reciprocal %51 {approx = true} : vector<8x1xf32> -> vector<8x1xf32>
    %53 = vector.broadcast %42 : vector<8x1xf32> to vector<8x128xf32>
    %54 = arith.mulf %53, %13 : vector<8x128xf32>
    %55 = vector.broadcast %44 : vector<8x1xf32> to vector<8x128xf32>
    %56 = arith.mulf %55, %21 : vector<8x128xf32>
    %57 = arith.addf %54, %56 : vector<8x128xf32>
    %58 = vector.broadcast %46 : vector<8x1xf32> to vector<8x128xf32>
    %59 = arith.mulf %58, %29 : vector<8x128xf32>
    %60 = arith.addf %57, %59 : vector<8x128xf32>
    %61 = vector.broadcast %48 : vector<8x1xf32> to vector<8x128xf32>
    %62 = arith.mulf %61, %37 : vector<8x128xf32>
    %63 = arith.addf %60, %62 : vector<8x128xf32>
    %64 = vector.broadcast %52 : vector<8x1xf32> to vector<8x128xf32>
    %65 = arith.mulf %63, %64 : vector<8x128xf32>
    %c0_19 = arith.constant 0 : index
    %c0_20 = arith.constant 0 : index
    %66 = vector.load %arg6[%c0_19, %c0_20] : memref<1x128xf32, #tpu.memory_space<vmem>>, vector<1x128xf32>
    %67 = vector.broadcast %66 : vector<1x128xf32> to vector<8x128xf32>
    %68 = arith.addf %65, %67 : vector<8x128xf32>
    %c0_21 = arith.constant 0 : index
    %c0_22 = arith.constant 0 : index
    %69 = vector.load %arg7[%c0_21, %c0_22] : memref<8x128xf32, #tpu.memory_space<vmem>>, vector<8x128xf32>
    tpu.vector_store %arg7[%c0_21, %c0_22], %68 {strides = array<i32>} : memref<8x128xf32, #tpu.memory_space<vmem>>, vector<8x128xf32>,
    return
  }
  func.func @transform_0(%arg0: i32) -> (i32, i32) {
    %c0_i32 = arith.constant 0 : i32
    %c0_i32_0 = arith.constant 0 : i32
    return %arg0, %c0_i32 : i32, i32
  }
  func.func @transform_1(%arg0: i32) -> (i32, i32) {
    %c0_i32 = arith.constant 0 : i32
    %c0_i32_0 = arith.constant 0 : i32
    return %arg0, %c0_i32 : i32, i32
  }
  func.func @transform_2(%arg0: i32) -> (i32, i32) {
    %c0_i32 = arith.constant 0 : i32
    %c0_i32_0 = arith.constant 0 : i32
    %c0_i32_1 = arith.constant 0 : i32
    return %c0_i32, %c0_i32_0 : i32, i32
  }
  func.func @transform_3(%arg0: i32) -> (i32, i32) {
    %c0_i32 = arith.constant 0 : i32
    %c0_i32_0 = arith.constant 0 : i32
    %c0_i32_1 = arith.constant 0 : i32
    return %c0_i32, %c0_i32_0 : i32, i32
  }
  func.func @transform_4(%arg0: i32) -> (i32, i32) {
    %c0_i32 = arith.constant 0 : i32
    %c0_i32_0 = arith.constant 0 : i32
    %c0_i32_1 = arith.constant 0 : i32
    return %c0_i32, %c0_i32_0 : i32, i32
  }
  func.func @transform_5(%arg0: i32) -> (i32, i32) {
    %c0_i32 = arith.constant 0 : i32
    %c0_i32_0 = arith.constant 0 : i32
    %c0_i32_1 = arith.constant 0 : i32
    return %c0_i32, %c0_i32_0 : i32, i32
  }
  func.func @transform_6(%arg0: i32) -> (i32, i32) {
    %c0_i32 = arith.constant 0 : i32
    %c0_i32_0 = arith.constant 0 : i32
    return %arg0, %c0_i32 : i32, i32
  }
}

</mosaic_0001>

<llo_original>
// kernel: tpu_custom_call.1
$region0: #{tpu_custom_call.1}
  #allocation0 [shape = 'u32[]', space=smem, size = 0x4, offset = 0x4, fixed_abs, tag = 'smem constant byte address 0x4 - core index']
  #allocation1 [shape = 'u32[144,128]{1,0:T(1,128)}', space=vmem, size = 0x12000, scoped, tag = 'internal scratch']
  %s0 = inlined_call_operand.hbm [shape: f32[16,128], index: 0, kind: input, shape index: {}]
  %s1 = inlined_call_operand.hbm [shape: f32[16,384], index: 1, kind: input, shape index: {}]
  %s2 = inlined_call_operand.hbm [shape: bf16[128,128], index: 2, kind: input, shape index: {}]
  %s3 = inlined_call_operand.hbm [shape: bf16[128,256], index: 3, kind: input, shape index: {}]
  %s4 = inlined_call_operand.vmem [shape: f32[1,128], index: 4, kind: input, shape index: {}]
  %s5 = inlined_call_operand.vmem [shape: f32[1,128], index: 5, kind: input, shape index: {}]
  %s6 = inlined_call_operand.hbm [shape: f32[16,128], index: 6, kind: output, shape index: {}]
  %s7 = sld [smem:[#allocation0]]
  $region73: #{tpu_custom_call.1} parent=0
    _
  %s9 = ssub.s32 1, %s7
  %s10 = scalar_select 0, %s9, %s7
  $region1: #{tpu_custom_call.1} parent=0
    #allocation2 [shape = 'u8[8192]{0}', space=vmem, size = 0x2000, scoped, tag = 'input window, operand 0']
    #allocation3 [shape = 's32[2]{0}', space=sflag, size = 0x8, scoped, tag = 'scoped memory for tpu_custom_call.1']
    #allocation4 [shape = 's32[2]{0}', space=sflag, size = 0x8, scoped, tag = 'scoped memory for tpu_custom_call.1']
    #allocation5 [shape = 'u8[24576]{0}', space=vmem, size = 0x6000, scoped, tag = 'input window, operand 1']
    #allocation6 [shape = 's32[2]{0}', space=sflag, size = 0x8, scoped, tag = 'scoped memory for tpu_custom_call.1']
    #allocation7 [shape = 'u8[32768]{0}', space=vmem, size = 0x8000, scoped, tag = 'input window, operand 2, single buffered']
    #allocation8 [shape = 'u8[65536]{0}', space=vmem, size = 0x10000, scoped, tag = 'input window, operand 3, single buffered']
    #allocation9 [shape = 's32[1]{0}', space=sflag, size = 0x4, scoped, tag = 'scoped memory for tpu_custom_call.1']
    #allocation10 [shape = 'u8[8192]{0}', space=vmem, size = 0x2000, scoped, tag = 'output window, operand 0']
    %11 = vsyncpa [#allocation3], 0
    %s12 = scalar_lea.sflag [#allocation3], 1
    %13 = vsyncpa %s12, 0
    %14 = vsyncpa [#allocation6], 0
    %s15 = scalar_lea.sflag [#allocation6], 1
    %16 = vsyncpa %s15, 0
    %17 = vsyncpa [#allocation9], 0
    %18 = vsyncpa [#allocation4], 0
    %s19 = scalar_lea.sflag [#allocation4], 1
    %20 = vsyncpa %s19, 0
    loop: start=0, step=1, limit=4
    $region2: #{tpu_custom_call.1} parent=1 // loop_pre_header
      _
    $region3: #{tpu_custom_call.1} parent=1 // loop_header
      %s22 = sphi 0, %s26
      %p23 = scmp.ge.s32.totalorder %s22, 4
      %s32 = sphi 0, %s34
      %s35 = sphi 0, %s32
      %s36 = sphi 0, %s35
      %s52 = sphi 0, %s36
      %s58 = sphi 0, %s60
      %s61 = sphi 0, %s58
      %s62 = sphi 0, %s61
      %s78 = sphi 0, %s62
      %s82 = sphi 0, %s82
      %s84 = sphi 0, %s82
      %s85 = sphi 0, %s84
      %s99 = sphi 0, %s85
      %s103 = sphi 0, %s103
      %s105 = sphi 0, %s103
      %s106 = sphi 0, %s105
      %s120 = sphi 0, %s106
      %s124 = sphi 0, %s124
      %s126 = sphi 0, %s124
      %s127 = sphi 0, %s126
      %s141 = sphi 0, %s127
      %s145 = sphi 0, %s145
      %s147 = sphi 0, %s145
      %s148 = sphi 0, %s147
      %s162 = sphi 0, %s148
      %s168 = sphi 0, %s170
      %s171 = sphi 0, %s168
      %s172 = sphi 0, %s171
      %s188 = sphi 0, %s172
    $region4: #{tpu_custom_call.1} parent=1 // loop_header_branch
      %25 = sbr.rel (%p23) target = $region8
    $region5: #{tpu_custom_call.1} parent=1 // loop_body
      %s27 = ssub.s32 %s22, 1
      %s28 = ssub.s32 %s22, 2
      %s29 = sadd.s32 %s22, 1
      %s30 = ssub.s32 %s22, %s29
      %p31 = scmp.eq.s32.totalorder %s30, 0
      %s33 = sadd.s32 %s32, 1
      %s34 = scalar_select %p31, %s32, %s33
      %p37 = pneg %p31
      %p38 = scmp.eq.s32.totalorder %s22, 1
      %p39 = por %p37, %p38
      %p40 = scmp.ne.s32.totalorder %s32, %s35
      %p41 = scmp.eq.s32.totalorder %s22, 0
      %p42 = por %p40, %p41
      %p43 = scmp.ne.s32.totalorder %s32, %s35
      %p44 = scmp.eq.s32.totalorder %s27, 1
      %p45 = por %p43, %p44
      %p46 = scmp.ne.s32.totalorder %s35, %s36
      %p47 = scmp.eq.s32.totalorder %s27, 0
      %p48 = por %p46, %p47
      %p49 = scmp.ne.s32.totalorder %s35, %s36
      %p50 = scmp.eq.s32.totalorder %s28, 1
      %p51 = por %p49, %p50
      %p53 = scmp.ne.s32.totalorder %s36, %s52
      %p54 = scmp.eq.s32.totalorder %s28, 0
      %p55 = por %p53, %p54
      %s56 = ssub.s32 %s22, %s29
      %p57 = scmp.eq.s32.totalorder %s56, 0
      %s59 = sadd.s32 %s58, 1
      %s60 = scalar_select %p57, %s58, %s59
      %p63 = pneg %p57
      %p64 = scmp.eq.s32.totalorder %s22, 1
      %p65 = por %p63, %p64
      %p66 = scmp.ne.s32.totalorder %s58, %s61
      %p67 = scmp.eq.s32.totalorder %s22, 0
      %p68 = por %p66, %p67
      %p69 = scmp.ne.s32.totalorder %s58, %s61
      %p70 = scmp.eq.s32.totalorder %s27, 1
      %p71 = por %p69, %p70
      %p72 = scmp.ne.s32.totalorder %s61, %s62
      %p73 = scmp.eq.s32.totalorder %s27, 0
      %p74 = por %p72, %p73
      %p75 = scmp.ne.s32.totalorder %s61, %s62
      %p76 = scmp.eq.s32.totalorder %s28, 1
      %p77 = por %p75, %p76
      %p79 = scmp.ne.s32.totalorder %s62, %s78
      %p80 = scmp.eq.s32.totalorder %s28, 0
      %p81 = por %p79, %p80
      %s83 = sadd.s32 %s82, 1
      %p86 = scmp.eq.s32.totalorder %s22, 1
      %p87 = scmp.ne.s32.totalorder %s82, %s84
      %p88 = scmp.eq.s32.totalorder %s22, 0
      %p89 = por %p87, %p88
      %p90 = scmp.ne.s32.totalorder %s82, %s84
      %p91 = scmp.eq.s32.totalorder %s27, 1
      %p92 = por %p90, %p91
      %p93 = scmp.ne.s32.totalorder %s84, %s85
      %p94 = scmp.eq.s32.totalorder %s27, 0
      %p95 = por %p93, %p94
      %p96 = scmp.ne.s32.totalorder %s84, %s85
      %p97 = scmp.eq.s32.totalorder %s28, 1
      %p98 = por %p96, %p97
      %p100 = scmp.ne.s32.totalorder %s85, %s99
      %p101 = scmp.eq.s32.totalorder %s28, 0
      %p102 = por %p100, %p101
      %s104 = sadd.s32 %s103, 1
      %p107 = scmp.eq.s32.totalorder %s22, 1
      %p108 = scmp.ne.s32.totalorder %s103, %s105
      %p109 = scmp.eq.s32.totalorder %s22, 0
      %p110 = por %p108, %p109
      %p111 = scmp.ne.s32.totalorder %s103, %s105
      %p112 = scmp.eq.s32.totalorder %s27, 1
      %p113 = por %p111, %p112
      %p114 = scmp.ne.s32.totalorder %s105, %s106
      %p115 = scmp.eq.s32.totalorder %s27, 0
      %p116 = por %p114, %p115
      %p117 = scmp.ne.s32.totalorder %s105, %s106
      %p118 = scmp.eq.s32.totalorder %s28, 1
      %p119 = por %p117, %p118
      %p121 = scmp.ne.s32.totalorder %s106, %s120
      %p122 = scmp.eq.s32.totalorder %s28, 0
      %p123 = por %p121, %p122
      %s125 = sadd.s32 %s124, 1
      %p128 = scmp.eq.s32.totalorder %s22, 1
      %p129 = scmp.ne.s32.totalorder %s124, %s126
      %p130 = scmp.eq.s32.totalorder %s22, 0
      %p131 = por %p129, %p130
      %p132 = scmp.ne.s32.totalorder %s124, %s126
      %p133 = scmp.eq.s32.totalorder %s27, 1
      %p134 = por %p132, %p133
      %p135 = scmp.ne.s32.totalorder %s126, %s127
      %p136 = scmp.eq.s32.totalorder %s27, 0
      %p137 = por %p135, %p136
      %p138 = scmp.ne.s32.totalorder %s126, %s127
      %p139 = scmp.eq.s32.totalorder %s28, 1
      %p140 = por %p138, %p139
      %p142 = scmp.ne.s32.totalorder %s127, %s141
      %p143 = scmp.eq.s32.totalorder %s28, 0
      %p144 = por %p142, %p143
      %s146 = sadd.s32 %s145, 1
      %p149 = scmp.eq.s32.totalorder %s22, 1
      %p150 = scmp.ne.s32.totalorder %s145, %s147
      %p151 = scmp.eq.s32.totalorder %s22, 0
      %p152 = por %p150, %p151
      %p153 = scmp.ne.s32.totalorder %s145, %s147
      %p154 = scmp.eq.s32.totalorder %s27, 1
      %p155 = por %p153, %p154
      %p156 = scmp.ne.s32.totalorder %s147, %s148
      %p157 = scmp.eq.s32.totalorder %s27, 0
      %p158 = por %p156, %p157
      %p159 = scmp.ne.s32.totalorder %s147, %s148
      %p160 = scmp.eq.s32.totalorder %s28, 1
      %p161 = por %p159, %p160
      %p163 = scmp.ne.s32.totalorder %s148, %s162
      %p164 = scmp.eq.s32.totalorder %s28, 0
      %p165 = por %p163, %p164
      %s166 = ssub.s32 %s22, %s29
      %p167 = scmp.eq.s32.totalorder %s166, 0
      %s169 = sadd.s32 %s168, 1
      %s170 = scalar_select %p167, %s168, %s169
      %p173 = pneg %p167
      %p174 = scmp.eq.s32.totalorder %s22, 1
      %p175 = por %p173, %p174
      %p176 = scmp.ne.s32.totalorder %s168, %s171
      %p177 = scmp.eq.s32.totalorder %s22, 0
      %p178 = por %p176, %p177
      %p179 = scmp.ne.s32.totalorder %s168, %s171
      %p180 = scmp.eq.s32.totalorder %s27, 1
      %p181 = por %p179, %p180
      %p182 = scmp.ne.s32.totalorder %s171, %s172
      %p183 = scmp.eq.s32.totalorder %s27, 0
      %p184 = por %p182, %p183
      %p185 = scmp.ne.s32.totalorder %s171, %s172
      %p186 = scmp.eq.s32.totalorder %s28, 1
      %p187 = por %p185, %p186
      %p189 = scmp.ne.s32.totalorder %s172, %s188
      %p190 = scmp.eq.s32.totalorder %s28, 0
      %p191 = por %p189, %p190
      %p192 = scmp.le.s32.totalorder 1, %s22
      %p193 = scmp.lt.s32.totalorder %s22, 3
      %p194 = pnand %p192, %p193
      %p195 = pneg %p194
      // Predicated region
      $region9: #{tpu_custom_call.1} parent=5 // pred_check
        _
      $region10: #{tpu_custom_call.1} parent=5 // pred_check_branch
        %197 = sbr.rel (%p194) target = $region12
      $region11: #{tpu_custom_call.1} parent=5 // pred_region
        %s198 = ssub.s32 %s22, 1
        // Predicated region
        $region13: #{tpu_custom_call.1} parent=11 // pred_check
          %p199 = pneg %p95
        $region14: #{tpu_custom_call.1} parent=11 // pred_check_branch
          %201 = sbr.rel (%p199) target = $region16
        $region15: #{tpu_custom_call.1} parent=11 // pred_region
          %s203 = ssub.s32 1024, 1024
          %204 = vsyncadd [#allocation6], %s203
          %s205 = sshll.u32 [#allocation7], 4
          %s206 = int_to_ptr.vmem [resolvable:$true] %s205
          %211 = dma.hbm_to_vmem [thread:$0]  %s2, 1024, %s206, [#allocation6], 64, 64, 4
        $region16: #{tpu_custom_call.1} parent=11 // pred_fallthru
          _
        // Predicated region
        $region17: #{tpu_custom_call.1} parent=11 // pred_check
          %p212 = pneg %p116
        $region18: #{tpu_custom_call.1} parent=11 // pred_check_branch
          %214 = sbr.rel (%p212) target = $region20
        $region19: #{tpu_custom_call.1} parent=11 // pred_region
          %s216 = ssub.s32 2048, 2048
          %217 = vsyncadd [#allocation9], %s216
          %s218 = sshll.u32 [#allocation8], 4
          %s219 = int_to_ptr.vmem [resolvable:$true] %s218
          %224 = dma.hbm_to_vmem [thread:$0]  %s3, 2048, %s219, [#allocation9], 128, 128, 8
        $region20: #{tpu_custom_call.1} parent=11 // pred_fallthru
          _
        // Predicated region
        $region21: #{tpu_custom_call.1} parent=11 // pred_check
          %p225 = pneg %p137
        $region22: #{tpu_custom_call.1} parent=11 // pred_check_branch
          %227 = sbr.rel (%p225) target = $region24
        $region23: #{tpu_custom_call.1} parent=11 // pred_region
          _
        $region24: #{tpu_custom_call.1} parent=11 // pred_fallthru
          _
        // Predicated region
        $region25: #{tpu_custom_call.1} parent=11 // pred_check
          %p228 = pneg %p158
        $region26: #{tpu_custom_call.1} parent=11 // pred_check_branch
          %230 = sbr.rel (%p228) target = $region28
        $region27: #{tpu_custom_call.1} parent=11 // pred_region
          _
        $region28: #{tpu_custom_call.1} parent=11 // pred_fallthru
          _
      $region12: #{tpu_custom_call.1} parent=5 // pred_fallthru
        _
      %p231 = scmp.lt.s32.totalorder %s22, 2
      // Predicated region
      $region29: #{tpu_custom_call.1} parent=5 // pred_check
        %p232 = pneg %p231
      $region30: #{tpu_custom_call.1} parent=5 // pred_check_branch
        %234 = sbr.rel (%p232) target = $region32
      $region31: #{tpu_custom_call.1} parent=5 // pred_region
        // Predicated region
        $region33: #{tpu_custom_call.1} parent=31 // pred_check
          %p235 = pneg %p42
        $region34: #{tpu_custom_call.1} parent=31 // pred_check_branch
          %237 = sbr.rel (%p235) target = $region36
        $region35: #{tpu_custom_call.1} parent=31 // pred_region
          %s238 = sand.u32 %s32, 1
          %s239 = scalar_lea.sflag [#allocation3], %s238
          %s240 = sand.u32 %s32, 1
          %s241 = smul.addr %s240, 8
          %s242 = scalar_lea.vmem [#allocation2], %s241
          %s244 = ssub.s32 128, 128
          %245 = vsyncadd %s239, %s244
          %s246 = smul.addr %s22, 128
          %s247 = scalar_lea.hbm %s0, %s246
          %s249 = sshll.u32 %s242, 4
          %s250 = int_to_ptr.vmem [resolvable:$true] %s249
          %252 = dma.hbm_to_vmem [thread:$0]  %s247, 128, %s250, %s239
        $region36: #{tpu_custom_call.1} parent=31 // pred_fallthru
          _
        // Predicated region
        $region37: #{tpu_custom_call.1} parent=31 // pred_check
          %p253 = pneg %p68
        $region38: #{tpu_custom_call.1} parent=31 // pred_check_branch
          %255 = sbr.rel (%p253) target = $region40
        $region39: #{tpu_custom_call.1} parent=31 // pred_region
          %s256 = sand.u32 %s22, 1
          %s257 = scalar_lea.sflag [#allocation6], %s256
          %s258 = sand.u32 %s58, 1
          %s259 = smul.addr %s258, 24
          %s260 = scalar_lea.vmem [#allocation5], %s259
          %s262 = ssub.s32 384, 384
          %263 = vsyncadd %s257, %s262
          %s264 = smul.addr %s22, 3
          %s265 = smul.addr %s264, 128
          %s266 = scalar_lea.hbm %s1, %s265
          %s268 = sshll.u32 %s260, 4
          %s269 = int_to_ptr.vmem [resolvable:$true] %s268
          %271 = dma.hbm_to_vmem [thread:$0]  %s266, 384, %s269, %s257
        $region40: #{tpu_custom_call.1} parent=31 // pred_fallthru
          _
      $region32: #{tpu_custom_call.1} parent=5 // pred_fallthru
        _
      %p272 = scmp.le.s32.totalorder 1, %s22
      %p273 = scmp.lt.s32.totalorder %s22, 3
      %p274 = pnand %p272, %p273
      %p275 = pneg %p274
      // Predicated region
      $region41: #{tpu_custom_call.1} parent=5 // pred_check
        _
      $region42: #{tpu_custom_call.1} parent=5 // pred_check_branch
        %277 = sbr.rel (%p274) target = $region44
      $region43: #{tpu_custom_call.1} parent=5 // pred_region
        %s278 = ssub.s32 %s22, 1
        %s279 = sand.u32 %s35, 1
        %s280 = scalar_lea.sflag [#allocation3], %s279
        %s281 = sand.u32 %s35, 1
        %s282 = smul.addr %s281, 8
        %s283 = scalar_lea.vmem [#allocation2], %s282
        // Predicated region
        $region45: #{tpu_custom_call.1} parent=43 // pred_check
          %p284 = pneg %p48
        $region46: #{tpu_custom_call.1} parent=43 // pred_check_branch
          %286 = sbr.rel (%p284) target = $region48
        $region47: #{tpu_custom_call.1} parent=43 // pred_region
          %287 = dma.done %s280, 128
        $region48: #{tpu_custom_call.1} parent=43 // pred_fallthru
          _
        %s288 = sand.u32 %s27, 1
        %s289 = scalar_lea.sflag [#allocation6], %s288
        %s290 = sand.u32 %s61, 1
        %s291 = smul.addr %s290, 24
        %s292 = scalar_lea.vmem [#allocation5], %s291
        // Predicated region
        $region49: #{tpu_custom_call.1} parent=43 // pred_check
          %p293 = pneg %p74
        $region50: #{tpu_custom_call.1} parent=43 // pred_check_branch
          %295 = sbr.rel (%p293) target = $region52
        $region51: #{tpu_custom_call.1} parent=43 // pred_region
          %296 = dma.done %s289, 384
        $region52: #{tpu_custom_call.1} parent=43 // pred_fallthru
          _
        // Predicated region
        $region53: #{tpu_custom_call.1} parent=43 // pred_check
          %p297 = pneg %p95
        $region54: #{tpu_custom_call.1} parent=43 // pred_check_branch
          %299 = sbr.rel (%p297) target = $region56
        $region55: #{tpu_custom_call.1} parent=43 // pred_region
          %300 = dma.done [#allocation6], 1024
        $region56: #{tpu_custom_call.1} parent=43 // pred_fallthru
          _
        // Predicated region
        $region57: #{tpu_custom_call.1} parent=43 // pred_check
          %p301 = pneg %p116
        $region58: #{tpu_custom_call.1} parent=43 // pred_check_branch
          %303 = sbr.rel (%p301) target = $region60
        $region59: #{tpu_custom_call.1} parent=43 // pred_region
          %304 = dma.done [#allocation9], 2048
        $region60: #{tpu_custom_call.1} parent=43 // pred_fallthru
          _
        %s305 = sand.u32 %s35, 1
        %s306 = scalar_lea.sflag [#allocation3], %s305
        %s307 = sand.u32 %s35, 1
        %s308 = smul.addr %s307, 8
        %s309 = scalar_lea.vmem [#allocation2], %s308
        %p310 = pneg %p48
        %p311 = pneg %p45
        %s312 = sand.u32 %s27, 1
        %s313 = scalar_lea.sflag [#allocation6], %s312
        %s314 = sand.u32 %s61, 1
        %s315 = smul.addr %s314, 24
        %s316 = scalar_lea.vmem [#allocation5], %s315
        %p317 = pneg %p74
        %p318 = pneg %p71
        %p319 = pneg %p95
        %p320 = pneg %p92
        %p321 = pneg %p116
        %p322 = pneg %p113
        %p323 = pneg %p137
        %p324 = pneg %p134
        %p325 = pneg %p158
        %p326 = pneg %p155
        %p327 = pneg %p184
        %p328 = pneg %p181
        %s329 = sand.u32 %s171, 1
        %s330 = scalar_lea.sflag [#allocation4], %s329
        %s331 = sand.u32 %s171, 1
        %s332 = smul.addr %s331, 8
        %s333 = scalar_lea.vmem [#allocation10], %s332
        %v335 = vld [vmem:[%s283] sm:$0xff]
        %v336 = vpack.c.bf16 %v335, %v335
        %v337 = vld [vmem:[#allocation7] sm:$0xf]
        %v338 = vld [vmem:[#allocation7 + $0x4] sm:$0xf]
        %v339 = vld [vmem:[#allocation7 + $0x8] sm:$0xf]
        %v340 = vld [vmem:[#allocation7 + $0xc] sm:$0xf]
        %v341 = vld [vmem:[#allocation7 + $0x10] sm:$0xf]
        %v342 = vld [vmem:[#allocation7 + $0x14] sm:$0xf]
        %v343 = vld [vmem:[#allocation7 + $0x18] sm:$0xf]
        %v344 = vld [vmem:[#allocation7 + $0x1c] sm:$0xf]
        %v345 = vld [vmem:[#allocation7 + $0x20] sm:$0xf]
        %v346 = vld [vmem:[#allocation7 + $0x24] sm:$0xf]
        %v347 = vld [vmem:[#allocation7 + $0x28] sm:$0xf]
        %v348 = vld [vmem:[#allocation7 + $0x2c] sm:$0xf]
        %v349 = vld [vmem:[#allocation7 + $0x30] sm:$0xf]
        %v350 = vld [vmem:[#allocation7 + $0x34] sm:$0xf]
        %v351 = vld [vmem:[#allocation7 + $0x38] sm:$0xf]
        %v352 = vld [vmem:[#allocation7 + $0x3c] sm:$0xf]
        %v353 = vld [vmem:[#allocation8] sm:$0xff]
        %v354 = vld [vmem:[#allocation8 + $0x8] sm:$0xff]
        %v355 = vld [vmem:[#allocation8 + $0x10] sm:$0xff]
        %v356 = vld [vmem:[#allocation8 + $0x18] sm:$0xff]
        %v357 = vld [vmem:[#allocation8 + $0x20] sm:$0xff]
        %v358 = vld [vmem:[#allocation8 + $0x28] sm:$0xff]
        %v359 = vld [vmem:[#allocation8 + $0x30] sm:$0xff]
        %v360 = vld [vmem:[#allocation8 + $0x38] sm:$0xff]
        %v361 = vld [vmem:[#allocation8 + $0x40] sm:$0xff]
        %v362 = vld [vmem:[#allocation8 + $0x48] sm:$0xff]
        %v363 = vld [vmem:[#allocation8 + $0x50] sm:$0xff]
        %v364 = vld [vmem:[#allocation8 + $0x58] sm:$0xff]
        %v365 = vld [vmem:[#allocation8 + $0x60] sm:$0xff]
        %v366 = vld [vmem:[#allocation8 + $0x68] sm:$0xff]
        %v367 = vld [vmem:[#allocation8 + $0x70] sm:$0xff]
        %v368 = vld [vmem:[#allocation8 + $0x78] sm:$0xff]
        %v369 = vld [vmem:[%s4] sm:$0x1]
        %v371 = vlaneseq
        %v372 = vshrl.u32 %v371, 7
        %v373 = vsub.s32 0, %v372
        %v374 = vrot.slane %v369, %v373
        %v392 = vunpack.c.l.b16 %v337
        %v393 = vunpack.c.l.b16 %v338
        %v394 = vunpack.c.l.b16 %v339
        %v395 = vunpack.c.l.b16 %v340
        %v396 = vunpack.c.l.b16 %v341
        %v397 = vunpack.c.l.b16 %v342
        %v398 = vunpack.c.l.b16 %v343
        %v399 = vunpack.c.l.b16 %v344
        %v400 = vunpack.c.l.b16 %v345
        %v401 = vunpack.c.l.b16 %v346
        %v402 = vunpack.c.l.b16 %v347
        %v403 = vunpack.c.l.b16 %v348
        %v404 = vunpack.c.l.b16 %v349
        %v405 = vunpack.c.l.b16 %v350
        %v406 = vunpack.c.l.b16 %v351
        %v407 = vunpack.c.l.b16 %v352
        %v408 = vpack.c.b16 %v393, %v392
        %v409 = vpack.c.b16 %v395, %v394
        %v410 = vpack.c.b16 %v397, %v396
        %v411 = vpack.c.b16 %v399, %v398
        %v412 = vpack.c.b16 %v401, %v400
        %v413 = vpack.c.b16 %v403, %v402
        %v414 = vpack.c.b16 %v405, %v404
        %v415 = vpack.c.b16 %v407, %v406
        %424 = vmatprep.subr.bf16.mxu0 0
        %425 = vmatpush1.bf16.msra.mxu0 %v408
        %426 = vmatprep.subr.bf16.mxu0 0
        %427 = vmatpush1.bf16.msra.mxu0 %v409
        %428 = vmatprep.subr.bf16.mxu0 0
        %429 = vmatpush1.bf16.msra.mxu0 %v410
        %430 = vmatprep.subr.bf16.mxu0 0
        %431 = vmatpush1.bf16.msra.mxu0 %v411
        %432 = vmatprep.subr.bf16.mxu0 0
        %433 = vmatpush1.bf16.msra.mxu0 %v412
        %434 = vmatprep.subr.bf16.mxu0 0
        %435 = vmatpush1.bf16.msra.mxu0 %v413
        %436 = vmatprep.subr.bf16.mxu0 0
        %437 = vmatpush1.bf16.msra.mxu0 %v414
        %438 = vmatprep.subr.bf16.mxu0 0
        %439 = vmatpush1.bf16.msra.mxu0 %v415
        %440 = vmatprep.subr.bf16.mxu0 0
        %441 = vmatpush1.bf16.msra.mxu0 0
        %442 = vmatprep.subr.bf16.mxu0 0
        %443 = vmatpush1.bf16.msra.mxu0 0
        %444 = vmatprep.subr.bf16.mxu0 0
        %445 = vmatpush1.bf16.msra.mxu0 0
        %446 = vmatprep.subr.bf16.mxu0 0
        %447 = vmatpush1.bf16.msra.mxu0 0
        %448 = vmatprep.subr.bf16.mxu0 0
        %449 = vmatpush1.bf16.msra.mxu0 0
        %450 = vmatprep.subr.bf16.mxu0 0
        %451 = vmatpush1.bf16.msra.mxu0 0
        %452 = vmatprep.subr.bf16.mxu0 0
        %453 = vmatpush1.bf16.msra.mxu0 0
        %454 = vmatprep.subr.bf16.mxu0 0
        %455 = vmatpush1.bf16.msra.mxu0 0
        %456 = vmatprep.mubr.bf16.mxu0 0
        %457 = vmatmul.mubr.bf16.gmra.mrb[0].mxu0 %v336
        %v458 = vpop.f32.mrb[0].mxu0
        %v459 = vadd.f32 %v374, %v458
        %v460 = vpop.f32.mrb[0].mxu0
        %v461 = vpop.f32.mrb[0].mxu0
        %v462 = vpop.f32.mrb[0].mxu0
        %463 = vdwg.mxu0
        %v480 = vunpack.c.l.b16 %v353
        %v481 = vunpack.c.h.b16 %v353
        %v482 = vunpack.c.l.b16 %v354
        %v483 = vunpack.c.h.b16 %v354
        %v484 = vunpack.c.l.b16 %v355
        %v485 = vunpack.c.h.b16 %v355
        %v486 = vunpack.c.l.b16 %v356
        %v487 = vunpack.c.h.b16 %v356
        %v488 = vunpack.c.l.b16 %v357
        %v489 = vunpack.c.h.b16 %v357
        %v490 = vunpack.c.l.b16 %v358
        %v491 = vunpack.c.h.b16 %v358
        %v492 = vunpack.c.l.b16 %v359
        %v493 = vunpack.c.h.b16 %v359
        %v494 = vunpack.c.l.b16 %v360
        %v495 = vunpack.c.h.b16 %v360
        %v496 = vunpack.c.l.b16 %v361
        %v497 = vunpack.c.h.b16 %v361
        %v498 = vunpack.c.l.b16 %v362
        %v499 = vunpack.c.h.b16 %v362
        %v500 = vunpack.c.l.b16 %v363
        %v501 = vunpack.c.h.b16 %v363
        %v502 = vunpack.c.l.b16 %v364
        %v503 = vunpack.c.h.b16 %v364
        %v504 = vunpack.c.l.b16 %v365
        %v505 = vunpack.c.h.b16 %v365
        %v506 = vunpack.c.l.b16 %v366
        %v507 = vunpack.c.h.b16 %v366
        %v508 = vunpack.c.l.b16 %v367
        %v509 = vunpack.c.h.b16 %v367
        %v510 = vunpack.c.l.b16 %v368
        %v511 = vunpack.c.h.b16 %v368
        %v512 = vpack.c.b16 %v482, %v480
        %v513 = vpack.c.b16 %v483, %v481
        %v514 = vpack.c.b16 %v486, %v484
        %v515 = vpack.c.b16 %v487, %v485
        %v516 = vpack.c.b16 %v490, %v488
        %v517 = vpack.c.b16 %v491, %v489
        %v518 = vpack.c.b16 %v494, %v492
        %v519 = vpack.c.b16 %v495, %v493
        %v520 = vpack.c.b16 %v498, %v496
        %v521 = vpack.c.b16 %v499, %v497
        %v522 = vpack.c.b16 %v502, %v500
        %v523 = vpack.c.b16 %v503, %v501
        %v524 = vpack.c.b16 %v506, %v504
        %v525 = vpack.c.b16 %v507, %v505
        %v526 = vpack.c.b16 %v510, %v508
        %v527 = vpack.c.b16 %v511, %v509
        %544 = vmatprep.subr.bf16.mxu0 %v513
        %545 = vmatpush1.bf16.msra.mxu0 %v512
        %546 = vmatprep.subr.bf16.mxu0 %v515
        %547 = vmatpush1.bf16.msra.mxu0 %v514
        %548 = vmatprep.subr.bf16.mxu0 %v517
        %549 = vmatpush1.bf16.msra.mxu0 %v516
        %550 = vmatprep.subr.bf16.mxu0 %v519
        %551 = vmatpush1.bf16.msra.mxu0 %v518
        %552 = vmatprep.subr.bf16.mxu0 %v521
        %553 = vmatpush1.bf16.msra.mxu0 %v520
        %554 = vmatprep.subr.bf16.mxu0 %v523
        %555 = vmatpush1.bf16.msra.mxu0 %v522
        %556 = vmatprep.subr.bf16.mxu0 %v525
        %557 = vmatpush1.bf16.msra.mxu0 %v524
        %558 = vmatprep.subr.bf16.mxu0 %v527
        %559 = vmatpush1.bf16.msra.mxu0 %v526
        %560 = vmatprep.subr.bf16.mxu0 0
        %561 = vmatpush1.bf16.msra.mxu0 0
        %562 = vmatprep.subr.bf16.mxu0 0
        %563 = vmatpush1.bf16.msra.mxu0 0
        %564 = vmatprep.subr.bf16.mxu0 0
        %565 = vmatpush1.bf16.msra.mxu0 0
        %566 = vmatprep.subr.bf16.mxu0 0
        %567 = vmatpush1.bf16.msra.mxu0 0
        %568 = vmatprep.subr.bf16.mxu0 0
        %569 = vmatpush1.bf16.msra.mxu0 0
        %570 = vmatprep.subr.bf16.mxu0 0
        %571 = vmatpush1.bf16.msra.mxu0 0
        %572 = vmatprep.subr.bf16.mxu0 0
        %573 = vmatpush1.bf16.msra.mxu0 0
        %574 = vmatprep.subr.bf16.mxu0 0
        %575 = vmatpush1.bf16.msra.mxu0 0
        %576 = vmatprep.mubr.bf16.mxu0 0
        %577 = vmatmul.mubr.bf16.gmra.mrb[0].mxu0 %v336
        %v578 = vpop.f32.mrb[0].mxu0
        %v579 = vadd.f32 0.0, %v578
        %v580 = vpop.f32.mrb[0].mxu0
        %v581 = vadd.f32 0.0, %v580
        %v582 = vpop.f32.mrb[0].mxu0
        %v583 = vpop.f32.mrb[0].mxu0
        %584 = vdwg.mxu0
        %v585 = vmul.f32 %v459, %v579
        %586 = vadd.xlane.f32.xlu0 %v585
        %v587 = vpop.xlane.xlu0 %586
        %v588 = vld [vmem:[%s292] sm:$0xff]
        %v589 = vpack.c.bf16 %v588, %v588
        %590 = vmatprep.subr.bf16.mxu0 %v513
        %591 = vmatpush1.bf16.msra.mxu0 %v512
        %592 = vmatprep.subr.bf16.mxu0 %v515
        %593 = vmatpush1.bf16.msra.mxu0 %v514
        %594 = vmatprep.subr.bf16.mxu0 %v517
        %595 = vmatpush1.bf16.msra.mxu0 %v516
        %596 = vmatprep.subr.bf16.mxu0 %v519
        %597 = vmatpush1.bf16.msra.mxu0 %v518
        %598 = vmatprep.subr.bf16.mxu0 %v521
        %599 = vmatpush1.bf16.msra.mxu0 %v520
        %600 = vmatprep.subr.bf16.mxu0 %v523
        %601 = vmatpush1.bf16.msra.mxu0 %v522
        %602 = vmatprep.subr.bf16.mxu0 %v525
        %603 = vmatpush1.bf16.msra.mxu0 %v524
        %604 = vmatprep.subr.bf16.mxu0 %v527
        %605 = vmatpush1.bf16.msra.mxu0 %v526
        %606 = vmatprep.subr.bf16.mxu0 0
        %607 = vmatpush1.bf16.msra.mxu0 0
        %608 = vmatprep.subr.bf16.mxu0 0
        %609 = vmatpush1.bf16.msra.mxu0 0
        %610 = vmatprep.subr.bf16.mxu0 0
        %611 = vmatpush1.bf16.msra.mxu0 0
        %612 = vmatprep.subr.bf16.mxu0 0
        %613 = vmatpush1.bf16.msra.mxu0 0
        %614 = vmatprep.subr.bf16.mxu0 0
        %615 = vmatpush1.bf16.msra.mxu0 0
        %616 = vmatprep.subr.bf16.mxu0 0
        %617 = vmatpush1.bf16.msra.mxu0 0
        %618 = vmatprep.subr.bf16.mxu0 0
        %619 = vmatpush1.bf16.msra.mxu0 0
        %620 = vmatprep.subr.bf16.mxu0 0
        %621 = vmatpush1.bf16.msra.mxu0 0
        %622 = vmatprep.mubr.bf16.mxu0 0
        %623 = vmatmul.mubr.bf16.gmra.mrb[0].mxu0 %v589
        %v624 = vpop.f32.mrb[0].mxu0
        %v625 = vadd.f32 0.0, %v624
        %v626 = vpop.f32.mrb[0].mxu0
        %v627 = vadd.f32 0.0, %v626
        %v628 = vpop.f32.mrb[0].mxu0
        %v629 = vpop.f32.mrb[0].mxu0
        %630 = vdwg.mxu0
        %v631 = vmul.f32 %v459, %v625
        %632 = vadd.xlane.f32.xlu0 %v631
        %v633 = vpop.xlane.xlu0 %632
        %v634 = vld [vmem:[%s292 + $0x8] sm:$0xff]
        %v635 = vpack.c.bf16 %v634, %v634
        %636 = vmatprep.subr.bf16.mxu0 %v513
        %637 = vmatpush1.bf16.msra.mxu0 %v512
        %638 = vmatprep.subr.bf16.mxu0 %v515
        %639 = vmatpush1.bf16.msra.mxu0 %v514
        %640 = vmatprep.subr.bf16.mxu0 %v517
        %641 = vmatpush1.bf16.msra.mxu0 %v516
        %642 = vmatprep.subr.bf16.mxu0 %v519
        %643 = vmatpush1.bf16.msra.mxu0 %v518
        %644 = vmatprep.subr.bf16.mxu0 %v521
        %645 = vmatpush1.bf16.msra.mxu0 %v520
        %646 = vmatprep.subr.bf16.mxu0 %v523
        %647 = vmatpush1.bf16.msra.mxu0 %v522
        %648 = vmatprep.subr.bf16.mxu0 %v525
        %649 = vmatpush1.bf16.msra.mxu0 %v524
        %650 = vmatprep.subr.bf16.mxu0 %v527
        %651 = vmatpush1.bf16.msra.mxu0 %v526
        %652 = vmatprep.subr.bf16.mxu0 0
        %653 = vmatpush1.bf16.msra.mxu0 0
        %654 = vmatprep.subr.bf16.mxu0 0
        %655 = vmatpush1.bf16.msra.mxu0 0
        %656 = vmatprep.subr.bf16.mxu0 0
        %657 = vmatpush1.bf16.msra.mxu0 0
        %658 = vmatprep.subr.bf16.mxu0 0
        %659 = vmatpush1.bf16.msra.mxu0 0
        %660 = vmatprep.subr.bf16.mxu0 0
        %661 = vmatpush1.bf16.msra.mxu0 0
        %662 = vmatprep.subr.bf16.mxu0 0
        %663 = vmatpush1.bf16.msra.mxu0 0
        %664 = vmatprep.subr.bf16.mxu0 0
        %665 = vmatpush1.bf16.msra.mxu0 0
        %666 = vmatprep.subr.bf16.mxu0 0
        %667 = vmatpush1.bf16.msra.mxu0 0
        %668 = vmatprep.mubr.bf16.mxu0 0
        %669 = vmatmul.mubr.bf16.gmra.mrb[0].mxu0 %v635
        %v670 = vpop.f32.mrb[0].mxu0
        %v671 = vadd.f32 0.0, %v670
        %v672 = vpop.f32.mrb[0].mxu0
        %v673 = vadd.f32 0.0, %v672
        %v674 = vpop.f32.mrb[0].mxu0
        %v675 = vpop.f32.mrb[0].mxu0
        %676 = vdwg.mxu0
        %v677 = vmul.f32 %v459, %v671
        %678 = vadd.xlane.f32.xlu0 %v677
        %v679 = vpop.xlane.xlu0 %678
        %v680 = vld [vmem:[%s292 + $0x10] sm:$0xff]
        %v681 = vpack.c.bf16 %v680, %v680
        %682 = vmatprep.subr.bf16.mxu0 %v513
        %683 = vmatpush1.bf16.msra.mxu0 %v512
        %684 = vmatprep.subr.bf16.mxu0 %v515
        %685 = vmatpush1.bf16.msra.mxu0 %v514
        %686 = vmatprep.subr.bf16.mxu0 %v517
        %687 = vmatpush1.bf16.msra.mxu0 %v516
        %688 = vmatprep.subr.bf16.mxu0 %v519
        %689 = vmatpush1.bf16.msra.mxu0 %v518
        %690 = vmatprep.subr.bf16.mxu0 %v521
        %691 = vmatpush1.bf16.msra.mxu0 %v520
        %692 = vmatprep.subr.bf16.mxu0 %v523
        %693 = vmatpush1.bf16.msra.mxu0 %v522
        %694 = vmatprep.subr.bf16.mxu0 %v525
        %695 = vmatpush1.bf16.msra.mxu0 %v524
        %696 = vmatprep.subr.bf16.mxu0 %v527
        %697 = vmatpush1.bf16.msra.mxu0 %v526
        %698 = vmatprep.subr.bf16.mxu0 0
        %699 = vmatpush1.bf16.msra.mxu0 0
        %700 = vmatprep.subr.bf16.mxu0 0
        %701 = vmatpush1.bf16.msra.mxu0 0
        %702 = vmatprep.subr.bf16.mxu0 0
        %703 = vmatpush1.bf16.msra.mxu0 0
        %704 = vmatprep.subr.bf16.mxu0 0
        %705 = vmatpush1.bf16.msra.mxu0 0
        %706 = vmatprep.subr.bf16.mxu0 0
        %707 = vmatpush1.bf16.msra.mxu0 0
        %708 = vmatprep.subr.bf16.mxu0 0
        %709 = vmatpush1.bf16.msra.mxu0 0
        %710 = vmatprep.subr.bf16.mxu0 0
        %711 = vmatpush1.bf16.msra.mxu0 0
        %712 = vmatprep.subr.bf16.mxu0 0
        %713 = vmatpush1.bf16.msra.mxu0 0
        %714 = vmatprep.mubr.bf16.mxu0 0
        %715 = vmatmul.mubr.bf16.gmra.mrb[0].mxu0 %v681
        %v716 = vpop.f32.mrb[0].mxu0
        %v717 = vadd.f32 0.0, %v716
        %v718 = vpop.f32.mrb[0].mxu0
        %v719 = vadd.f32 0.0, %v718
        %v720 = vpop.f32.mrb[0].mxu0
        %v721 = vpop.f32.mrb[0].mxu0
        %722 = vdwg.mxu0
        %v723 = vmul.f32 %v459, %v717
        %724 = vadd.xlane.f32.xlu0 %v723
        %v725 = vpop.xlane.xlu0 %724
        %v726 = vmax.f32 %v587, %v633
        %v727 = vmax.f32 %v726, %v679
        %v728 = vmax.f32 %v727, %v725
        %v729 = vsub.f32 %v587, %v728
        %v730 = vmul.f32 %v729, 1.442695
        %v731 = vpow.pop %v730
        %v732 = vsub.f32 %v633, %v728
        %v733 = vmul.f32 %v732, 1.442695
        %v734 = vpow.pop %v733
        %v735 = vsub.f32 %v679, %v728
        %v736 = vmul.f32 %v735, 1.442695
        %v737 = vpow.pop %v736
        %v738 = vsub.f32 %v725, %v728
        %v739 = vmul.f32 %v738, 1.442695
        %v740 = vpow.pop %v739
        %v741 = vadd.f32 %v731, %v734
        %v742 = vadd.f32 %v741, %v737
        %v743 = vadd.f32 %v742, %v740
        %v744 = vrcp.pop %v743
        %v745 = vmul.f32 %v731, %v581
        %v746 = vmul.f32 %v734, %v627
        %v747 = vadd.f32 %v745, %v746
        %v748 = vmul.f32 %v737, %v673
        %v749 = vadd.f32 %v747, %v748
        %v750 = vmul.f32 %v740, %v719
        %v751 = vadd.f32 %v749, %v750
        %v752 = vmul.f32 %v751, %v744
        %v753 = vld [vmem:[%s5] sm:$0x1]
        %v755 = vlaneseq
        %v756 = vshrl.u32 %v755, 7
        %v757 = vsub.s32 0, %v756
        %v758 = vrot.slane %v753, %v757
        %v760 = vadd.f32 %v752, %v758
        %761 = vst [vmem:[%s333] sm:$0xff] %v760
        %s762 = sand.u32 %s171, 1
        %s763 = scalar_lea.sflag [#allocation4], %s762
        %s764 = sand.u32 %s171, 1
        %s765 = smul.addr %s764, 8
        %s766 = scalar_lea.vmem [#allocation10], %s765
        // Predicated region
        $region61: #{tpu_custom_call.1} parent=43 // pred_check
          %p767 = pneg %p181
        $region62: #{tpu_custom_call.1} parent=43 // pred_check_branch
          %769 = sbr.rel (%p767) target = $region64
        $region63: #{tpu_custom_call.1} parent=43 // pred_region
          %s771 = ssub.s32 128, 128
          %772 = vsyncadd %s763, %s771
          %s773 = smul.addr %s27, 128
          %s774 = scalar_lea.hbm %s6, %s773
          %s776 = sshll.u32 %s766, 4
          %s777 = int_to_ptr.vmem [resolvable:$true] %s776
          %779 = dma.vmem_to_hbm [thread:$0]  %s777, 128, %s774, %s763
        $region64: #{tpu_custom_call.1} parent=43 // pred_fallthru
          _
      $region44: #{tpu_custom_call.1} parent=5 // pred_fallthru
        _
      %p780 = scmp.le.s32.totalorder 2, %s22
      // Predicated region
      $region65: #{tpu_custom_call.1} parent=5 // pred_check
        %p781 = pneg %p780
      $region66: #{tpu_custom_call.1} parent=5 // pred_check_branch
        %783 = sbr.rel (%p781) target = $region68
      $region67: #{tpu_custom_call.1} parent=5 // pred_region
        %s784 = ssub.s32 %s22, 2
        // Predicated region
        $region69: #{tpu_custom_call.1} parent=67 // pred_check
          %p785 = pneg %p187
        $region70: #{tpu_custom_call.1} parent=67 // pred_check_branch
          %787 = sbr.rel (%p785) target = $region72
        $region71: #{tpu_custom_call.1} parent=67 // pred_region
          %s788 = sand.u32 %s172, 1
          %s789 = scalar_lea.sflag [#allocation4], %s788
          %s790 = sand.u32 %s172, 1
          %s791 = smul.addr %s790, 8
          %s792 = scalar_lea.vmem [#allocation10], %s791
          %793 = dma.done %s789, 128
        $region72: #{tpu_custom_call.1} parent=67 // pred_fallthru
          _
      $region68: #{tpu_custom_call.1} parent=5 // pred_fallthru
        _
    $region6: #{tpu_custom_call.1} parent=1 // loop_footer
      %s26 = sadd.s32 1, %s22
    $region7: #{tpu_custom_call.1} parent=1 // loop_footer_branch
      %21 = sbr.rel target = $region3
    $region8: #{tpu_custom_call.1} parent=1 // loop_exit
      _
    %794 = vsyncpa [#allocation3], 1
    %s795 = scalar_lea.sflag [#allocation3], 1
    %796 = vsyncpa %s795, 1
    %797 = vsyncpa [#allocation6], 1
    %s798 = scalar_lea.sflag [#allocation6], 1
    %799 = vsyncpa %s798, 1
    %800 = vsyncpa [#allocation9], 1
    %801 = vsyncpa [#allocation4], 1
    %s802 = scalar_lea.sflag [#allocation4], 1
    %803 = vsyncpa %s802, 1

</llo_original>
